<compile_context>
chip_gen: v5e
topology: v5e:2x2
jax: 0.10.0
libtpu: 0.0.40
codegen_flags: <defaults>
</compile_context>

<pallas_src>
import functools

import jax
import jax.numpy as jnp
from jax.experimental import pallas as pl
from jax.experimental.pallas import tpu as pltpu

VMEM_SPEC = pl.BlockSpec(memory_space=pltpu.MemorySpace.VMEM)


def _rep_spec(shape):
    """Full-array block replicated across the grid (constant block index)."""
    n = len(shape)
    return pl.BlockSpec(shape, lambda *_: (0,) * n)


def _ln(x, g, b, eps=1e-12):
    """LayerNorm over the last (hidden) axis, f32 math."""
    mu = jnp.mean(x, axis=-1, keepdims=True)
    xc = x - mu
    var = jnp.mean(xc * xc, axis=-1, keepdims=True)
    return xc * jax.lax.rsqrt(var + eps) * g + b


def _unpack(vec, sizes):
    """Static lane-slices of the packed (1, P) per-layer parameter slab."""
    out, off = [], 0
    for n in sizes:
        out.append(vec[:, off:off + n])
        off += n
    return out


# ------------------------- embedding sum + LayerNorm ------------------------ #

def _emb_ln_kernel(we_ref, te_ref, pe_ref, g_ref, b_ref, o_ref):
    # Whole (B, S, H) batch in one launch: no per-batch grid overhead.
    x = we_ref[...] + te_ref[...] + pe_ref[...]          # pe broadcasts over batch
    o_ref[...] = _ln(x, g_ref[...], b_ref[...]).astype(o_ref.dtype)


def emb_layernorm(we, te, pe, gamma, beta):
    B, S, H = we.shape
    return pl.pallas_call(
        _emb_ln_kernel,
        out_shape=jax.ShapeDtypeStruct((B, S, H), jnp.bfloat16),
        in_specs=[VMEM_SPEC] * 5,
        out_specs=VMEM_SPEC,
    )(we, te, pe, gamma, beta)


# ------------------------------ fused BERT layer ---------------------------- #

def _bert_layer_kernel(h_ref, bias_ref, wqkv_ref, wo_ref, w1_ref, w2_ref, vec_ref,
                       o_ref, *, nH, dH, inter, scale):
    H = nH * dH
    h16 = h_ref[0]                                   # (S, H) bf16 residual stream
    S = h16.shape[0]
    bias = bias_ref[0]                               # (S, S) pre-broadcast additive mask

    bqkv, bo, ln1g, ln1b, b1, b2, ln2g, ln2b = _unpack(
        vec_ref[...], (3 * H, H, H, H, inter, H, H, H))

    # Fused Q/K/V projection: one bf16 MXU matmul, f32 accumulate.
    qkv = jnp.dot(h16, wqkv_ref[...], preferred_element_type=jnp.float32) + bqkv  # (S, 3H)

    # Scale folded into Q once; single bf16 cast of Q/K/V (no per-head casts).
    q_all = (qkv[:, :H] * scale).astype(jnp.bfloat16)
    k_all = qkv[:, H:2 * H].astype(jnp.bfloat16)
    v_all = qkv[:, 2 * H:3 * H].astype(jnp.bfloat16)

    # Per-head attention (static Python loop, nH small). Head slices are sub-128-lane at this
    # toy H; at BERT-base scale lay qkv out head-major / (nH, S, dH) for vreg-aligned slices.
    ctx_heads = []
    for hh in range(nH):
        q = q_all[:, hh * dH:(hh + 1) * dH]
        k = k_all[:, hh * dH:(hh + 1) * dH]
        v = v_all[:, hh * dH:(hh + 1) * dH]
        s = jnp.dot(q, k.T, preferred_element_type=jnp.float32) + bias      # (S, S)
        m = jnp.max(s, axis=-1, keepdims=True)
        p = jnp.exp(s - m)
        p = p * pl.reciprocal(jnp.sum(p, axis=-1, keepdims=True), approx=True)
        o = jnp.dot(p.astype(jnp.bfloat16), v, preferred_element_type=jnp.float32)
        ctx_heads.append(o.astype(jnp.bfloat16))                            # (S, dH)

    # Single output projection on the concatenated context (one MXU op, K=H).
    ctx = jnp.concatenate(ctx_heads, axis=-1)                               # (S, H) bf16
    attn = jnp.dot(ctx, wo_ref[...], preferred_element_type=jnp.float32) + bo

    # Residual + LayerNorm 1 (dropout = identity, eval semantics).
    x = _ln(h16.astype(jnp.float32) + attn, ln1g, ln1b)

    # Feed-forward: dense + GELU + dense, residual + LayerNorm 2.
    ff = jnp.dot(x.astype(jnp.bfloat16), w1_ref[...],
                 preferred_element_type=jnp.float32) + b1
    # TODO(synk): BERT reference GELU is erf-based; tanh approximation differs by <1e-3.
    ff = jax.nn.gelu(ff, approximate=True)
    ff = jnp.dot(ff.astype(jnp.bfloat16), w2_ref[...],
                 preferred_element_type=jnp.float32) + b2

    o_ref[0] = _ln(x + ff, ln2g, ln2b).astype(o_ref.dtype)


def bert_layer(h, mask_bias, lyr, *, S, nH, dH, inter):
    B = h.shape[0]
    H = nH * dH
    row = pl.BlockSpec((1, S, H), lambda b: (b, 0, 0))
    bias_spec = pl.BlockSpec((1, S, S), lambda b: (b, 0, 0))
    return pl.pallas_call(
        functools.partial(_bert_layer_kernel, nH=nH, dH=dH, inter=inter,
                          scale=1.0 / (dH ** 0.5)),
        out_shape=jax.ShapeDtypeStruct((B, S, H), jnp.bfloat16),
        grid=(B,),
        in_specs=[row, bias_spec,
                  _rep_spec(lyr["wqkv"].shape), _rep_spec(lyr["wo"].shape),
                  _rep_spec(lyr["w1"].shape), _rep_spec(lyr["w2"].shape),
                  _rep_spec(lyr["vec"].shape)],
        out_specs=row,
        compiler_params=pltpu.CompilerParams(dimension_semantics=("parallel",)),
    )(h, mask_bias, lyr["wqkv"], lyr["wo"], lyr["w1"], lyr["w2"], lyr["vec"])


# ----------------- pooler + classifier + BCE-with-logits loss --------------- #

def _head_kernel(h_ref, pw_ref, pb_ref, cw_ref, cb_ref, y_ref,
                 logits_ref, loss_ref, *, B, S, label_num):
    hb = h_ref[...]                                            # (B, S, H) bf16
    # [CLS] rows gathered in-kernel with static slices (no XLA strided gather).
    cls = jnp.concatenate([hb[b, 0:1, :] for b in range(B)], axis=0)   # (B, H) bf16

    # Pooler: dense(tanh) on the [CLS] hidden state.
    pooled = jnp.tanh(
        jnp.dot(cls, pw_ref[...], preferred_element_type=jnp.float32) + pb_ref[...])
    # TODO(synk): nn.Dropout(0.1) before the classifier is stochastic in train mode;
    # modeled as identity (eval semantics).
    logits = jnp.dot(pooled.astype(jnp.bfloat16), cw_ref[...],
                     preferred_element_type=jnp.float32) + cb_ref[...]       # (B, Lpad)
    logits_ref[...] = logits.astype(logits_ref.dtype)

    # BCEWithLogitsLoss (mean over the real B*label_num entries).
    lg = logits[:, :label_num]                                 # (B, L)
    y = y_ref[...]                                             # (B, L)
    l = jnp.maximum(lg, 0.0) - lg * y + jnp.log1p(jnp.exp(-jnp.abs(lg)))
    total = jnp.sum(jnp.sum(l, axis=1, keepdims=True), axis=0, keepdims=True)
    mean = total / (B * label_num)
    loss_ref[...] = jnp.broadcast_to(mean, loss_ref.shape).astype(loss_ref.dtype)


def head_classifier_loss(h, pool_w, pool_b, cls_w, cls_b, labels, *, S, label_num):
    B = h.shape[0]
    Lpad = cls_w.shape[1]
    return pl.pallas_call(
        functools.partial(_head_kernel, B=B, S=S, label_num=label_num),
        out_shape=(jax.ShapeDtypeStruct((B, Lpad), jnp.float32),
                   jax.ShapeDtypeStruct((1, 128), jnp.float32)),
        in_specs=[VMEM_SPEC] * 6,
        out_specs=(VMEM_SPEC, VMEM_SPEC),
    )(h, pool_w, pool_b, cls_w, cls_b, labels)


# --------------------------- parameter construction ------------------------- #

def init_params(key, *, vocab=128, hidden=32, layers=2, heads=2, inter=64,
                max_pos=64, type_vocab=2, label_num=14):
    lpad = ((label_num + 127) // 128) * 128          # lane-dense classifier output
    cfg = dict(vocab=vocab, hidden=hidden, layers=layers, heads=heads,
               inter=inter, max_pos=max_pos, type_vocab=type_vocab,
               label_num=label_num, label_pad=lpad)
    keys = iter(jax.random.split(key, 8 + layers * 6))

    def nrm(shape, dtype=jnp.float32):
        return (0.02 * jax.random.normal(next(keys), shape)).astype(dtype)

    cls_w = jnp.zeros((hidden, lpad), jnp.float32)
    cls_w = cls_w.at[:, :label_num].set(nrm((hidden, label_num)))

    params = {
        "config": cfg,
        "word_emb": nrm((vocab, hidden)),
        "type_emb": nrm((type_vocab, hidden)),
        "pos_emb": nrm((max_pos, hidden)),
        "emb_ln_g": jnp.ones((1, hidden), jnp.float32),
        "emb_ln_b": jnp.zeros((1, hidden), jnp.float32),
        "pool_w": nrm((hidden, hidden), jnp.bfloat16),
        "pool_b": jnp.zeros((1, hidden), jnp.float32),
        "cls_w": cls_w.astype(jnp.bfloat16),
        "cls_b": jnp.zeros((1, lpad), jnp.float32),
        "layers": [],
    }
    for _ in range(layers):
        # All tiny per-layer vectors packed into one (1, P) slab:
        # [bqkv | bo | ln1_g | ln1_b | b1 | b2 | ln2_g | ln2_b]
        vec = jnp.concatenate([
            jnp.zeros((1, 3 * hidden)),   # bqkv
            jnp.zeros((1, hidden)),       # bo
            jnp.ones((1, hidden)),        # ln1_g
            jnp.zeros((1, hidden)),       # ln1_b
            jnp.zeros((1, inter)),        # b1
            jnp.zeros((1, hidden)),       # b2
            jnp.ones((1, hidden)),        # ln2_g
            jnp.zeros((1, hidden)),       # ln2_b
        ], axis=1).astype(jnp.float32)
        lyr = {
            "wqkv": nrm((hidden, 3 * hidden), jnp.bfloat16),   # fused Q|K|V
            "wo": nrm((hidden, hidden), jnp.bfloat16),
            "w1": nrm((hidden, inter), jnp.bfloat16),
            "w2": nrm((inter, hidden), jnp.bfloat16),
            "vec": vec,
        }
        params["layers"].append(lyr)
    return params


# -------------------------------- forward ----------------------------------- #

def sentence_multilabel_forward(params, input_ids, token_type_ids,
                                attention_mask, labels=None):
    cfg = params["config"]
    B, S = input_ids.shape
    H, nH, L = cfg["hidden"], cfg["heads"], cfg["label_num"]
    dH = H // nH

    # TODO(synk): embedding gathers stay in XLA (data-dependent lookup); could be fused via
    # PrefetchScalarGridSpec + pl.Element row-gather at larger scale.
    we = params["word_emb"][input_ids]           # (B, S, H)
    te = params["type_emb"][token_type_ids]      # (B, S, H)
    pe = params["pos_emb"][:S]                   # (S, H)
    h = emb_layernorm(we, te, pe, params["emb_ln_g"], params["emb_ln_b"])

    # Additive attention-mask bias, pre-broadcast ONCE to (B, S, S) for all layers/heads.
    mb = ((1.0 - attention_mask.astype(jnp.float32)) * -1e9)[:, None, :]
    mask_bias = jnp.broadcast_to(mb, (B, S, S))

    for lyr in params["layers"]:
        h = bert_layer(h, mask_bias, lyr, S=S, nH=nH, dH=dH, inter=cfg["inter"])

    y = labels.astype(jnp.float32) if labels is not None else jnp.zeros((B, L), jnp.float32)

    logits_pad, loss_slab = head_classifier_loss(
        h, params["pool_w"], params["pool_b"],
        params["cls_w"], params["cls_b"], y, S=S, label_num=L)

    logits = logits_pad[:, :L]
    loss = loss_slab[0, 0] if labels is not None else None
    return logits, loss


# ---------------------------------- main ------------------------------------ #

if __name__ == "__main__":
    key = jax.random.PRNGKey(0)
    k_param, k_ids, k_lab = jax.random.split(key, 3)

    B, S, LABELS = 2, 8, 14
    params = init_params(k_param, vocab=128, hidden=32, layers=2, heads=2,
                         inter=64, max_pos=64, type_vocab=2, label_num=LABELS)

    input_ids = jax.random.randint(k_ids, (B, S), 0, 128, dtype=jnp.int32)
    token_type_ids = jnp.zeros((B, S), jnp.int32)
    attention_mask = jnp.array(
        [[1, 1, 1, 1, 1, 1, 1, 1],
         [1, 1, 1, 1, 1, 1, 0, 0]], dtype=jnp.int32)
    labels = jax.random.bernoulli(k_lab, 0.3, (B, LABELS)).astype(jnp.float32)

    logits, loss = sentence_multilabel_forward(
        params, input_ids, token_type_ids, attention_mask, labels)

    logits = jax.block_until_ready(logits)
    loss = jax.block_until_ready(loss)
    assert logits.shape == (B, LABELS)
    assert loss.shape == ()
    assert bool(jnp.isfinite(loss))
    print("KERNEL_OK")
</pallas_src>

<mosaic_0001>
module attributes {stable_mosaic.version = 11 : i64} {
  func.func @_emb_ln_kernel(%arg0: memref<2x8x32xf32, #tpu.memory_space<vmem>>, %arg1: memref<2x8x32xf32, #tpu.memory_space<vmem>>, %arg2: memref<8x32xf32, #tpu.memory_space<vmem>>, %arg3: memref<1x32xf32, #tpu.memory_space<vmem>>, %arg4: memref<1x32xf32, #tpu.memory_space<vmem>>, %arg5: memref<2x8x32xbf16, #tpu.memory_space<vmem>>) attributes {dimension_semantics = [], scalar_prefetch = 0 : i64, scratch_operands = 0 : i64, tpu.core_type = #tpu.core_type<tc>} {
    %c0 = arith.constant 0 : index
    %c0_0 = arith.constant 0 : index
    %c0_1 = arith.constant 0 : index
    %0 = vector.load %arg0[%c0, %c0_0, %c0_1] : memref<2x8x32xf32, #tpu.memory_space<vmem>>, vector<2x8x32xf32>
    %c0_2 = arith.constant 0 : index
    %c0_3 = arith.constant 0 : index
    %c0_4 = arith.constant 0 : index
    %1 = vector.load %arg1[%c0_2, %c0_3, %c0_4] : memref<2x8x32xf32, #tpu.memory_space<vmem>>, vector<2x8x32xf32>
    %2 = arith.addf %0, %1 : vector<2x8x32xf32>
    %c0_5 = arith.constant 0 : index
    %c0_6 = arith.constant 0 : index
    %3 = vector.load %arg2[%c0_5, %c0_6] : memref<8x32xf32, #tpu.memory_space<vmem>>, vector<8x32xf32>
    %4 = vector.shape_cast %3 : vector<8x32xf32> to vector<1x8x32xf32>
    %5 = vector.broadcast %4 : vector<1x8x32xf32> to vector<2x8x32xf32>
    %6 = arith.addf %2, %5 : vector<2x8x32xf32>
    %c0_7 = arith.constant 0 : index
    %c0_8 = arith.constant 0 : index
    %7 = vector.load %arg3[%c0_7, %c0_8] : memref<1x32xf32, #tpu.memory_space<vmem>>, vector<1x32xf32>
    %c0_9 = arith.constant 0 : index
    %c0_10 = arith.constant 0 : index
    %8 = vector.load %arg4[%c0_9, %c0_10] : memref<1x32xf32, #tpu.memory_space<vmem>>, vector<1x32xf32>
    %cst = arith.constant dense<0.000000e+00> : vector<2x8xf32>
    %9 = vector.multi_reduction <add>, %6, %cst [2] : vector<2x8x32xf32> to vector<2x8xf32>
    %10 = vector.shape_cast %9 : vector<2x8xf32> to vector<2x8x1xf32>
    %cst_11 = arith.constant 3.200000e+01 : f32
    %11 = vector.broadcast %cst_11 : f32 to vector<2x8x1xf32>
    %12 = arith.divf %10, %11 : vector<2x8x1xf32>
    %13 = vector.broadcast %12 : vector<2x8x1xf32> to vector<2x8x32xf32>
    %14 = arith.subf %6, %13 : vector<2x8x32xf32>
    %15 = arith.mulf %14, %14 : vector<2x8x32xf32>
    %cst_12 = arith.constant dense<0.000000e+00> : vector<2x8xf32>
    %16 = vector.multi_reduction <add>, %15, %cst_12 [2] : vector<2x8x32xf32> to vector<2x8xf32>
    %17 = vector.shape_cast %16 : vector<2x8xf32> to vector<2x8x1xf32>
    %cst_13 = arith.constant 3.200000e+01 : f32
    %18 = vector.broadcast %cst_13 : f32 to vector<2x8x1xf32>
    %19 = arith.divf %17, %18 : vector<2x8x1xf32>
    %cst_14 = arith.constant 9.99999996E-13 : f32
    %20 = vector.broadcast %cst_14 : f32 to vector<2x8x1xf32>
    %21 = arith.addf %19, %20 : vector<2x8x1xf32>
    %22 = math.rsqrt %21 : vector<2x8x1xf32>
    %23 = vector.broadcast %22 : vector<2x8x1xf32> to vector<2x8x32xf32>
    %24 = arith.mulf %14, %23 : vector<2x8x32xf32>
    %25 = vector.shape_cast %7 : vector<1x32xf32> to vector<1x1x32xf32>
    %26 = vector.broadcast %25 : vector<1x1x32xf32> to vector<2x8x32xf32>
    %27 = arith.mulf %24, %26 : vector<2x8x32xf32>
    %28 = vector.shape_cast %8 : vector<1x32xf32> to vector<1x1x32xf32>
    %29 = vector.broadcast %28 : vector<1x1x32xf32> to vector<2x8x32xf32>
    %30 = arith.addf %27, %29 : vector<2x8x32xf32>
    %31 = arith.truncf %30 : vector<2x8x32xf32> to vector<2x8x32xbf16>
    %c0_15 = arith.constant 0 : index
    %c0_16 = arith.constant 0 : index
    %c0_17 = arith.constant 0 : index
    %32 = vector.load %arg5[%c0_15, %c0_16, %c0_17] : memref<2x8x32xbf16, #tpu.memory_space<vmem>>, vector<2x8x32xbf16>
    tpu.vector_store %arg5[%c0_15, %c0_16, %c0_17], %31 {strides = array<i32>} : memref<2x8x32xbf16, #tpu.memory_space<vmem>>, vector<2x8x32xbf16>,
    return
  }
}

</mosaic_0001>

<llo_original>
// kernel: tpu_custom_call.1
$region0: #{tpu_custom_call.1}
  #allocation0 [shape = 'u32[]', space=smem, size = 0x4, offset = 0x4, fixed_abs, tag = 'smem constant byte address 0x4 - core index']
  #allocation1 [shape = 'u32[72,128]{1,0:T(1,128)}', space=vmem, size = 0x9000, scoped, tag = 'internal scratch']
  %s0 = inlined_call_operand.hbm [shape: f32[2,8,32], index: 0, kind: input, shape index: {}]
  %s1 = inlined_call_operand.hbm [shape: f32[2,8,32], index: 1, kind: input, shape index: {}]
  %s2 = inlined_call_operand.hbm [shape: f32[8,32], index: 2, kind: input, shape index: {}]
  %s3 = inlined_call_operand.vmem [shape: f32[1,32], index: 3, kind: input, shape index: {}]
  %s4 = inlined_call_operand.vmem [shape: f32[1,32], index: 4, kind: input, shape index: {}]
  %s5 = inlined_call_operand.hbm [shape: bf16[2,8,32], index: 5, kind: output, shape index: {}]
  %s6 = sld [smem:[#allocation0]]
  $region42: #{tpu_custom_call.1} parent=0
    _
  %s8 = ssub.s32 1, %s6
  %s9 = scalar_select 0, %s8, %s6
  $region1: #{tpu_custom_call.1} parent=0
    #allocation2 [shape = 'u8[8192]{0}', space=vmem, size = 0x2000, scoped, tag = 'input window, operand 0, single buffered']
    #allocation3 [shape = 's32[1]{0}', space=sflag, size = 0x4, scoped, tag = 'scoped memory for tpu_custom_call.1']
    #allocation4 [shape = 's32[1]{0}', space=sflag, size = 0x4, scoped, tag = 'scoped memory for tpu_custom_call.1']
    #allocation5 [shape = 'u8[8192]{0}', space=vmem, size = 0x2000, scoped, tag = 'input window, operand 1, single buffered']
    #allocation6 [shape = 's32[1]{0}', space=sflag, size = 0x4, scoped, tag = 'scoped memory for tpu_custom_call.1']
    #allocation7 [shape = 'u8[4096]{0}', space=vmem, size = 0x1000, scoped, tag = 'input window, operand 2, single buffered']
    #allocation8 [shape = 'u8[4096]{0}', space=vmem, size = 0x1000, scoped, tag = 'output window, operand 0, single buffered']
    %10 = vsyncpa [#allocation3], 0
    %11 = vsyncpa [#allocation6], 0
    %12 = vsyncpa [#allocation4], 0
    // Predicated region
    $region2: #{tpu_custom_call.1} parent=1 // pred_check
      _
    $region3: #{tpu_custom_call.1} parent=1 // pred_check_branch
      %14 = sbr.rel (0) target = $region5
    $region4: #{tpu_custom_call.1} parent=1 // pred_region
      %16 = vsyncadd [#allocation3], 0
      %s17 = sshll.u32 %s0, 4
      %s18 = int_to_ptr.hbm [resolvable:$true] %s17
      %s19 = sshll.u32 [#allocation2], 4
      %s20 = int_to_ptr.vmem [resolvable:$true] %s19
      %25 = dma.hbm_to_vmem [thread:$0]  %s18, 256, %s20, [#allocation3], 128, 128, 8
    $region5: #{tpu_custom_call.1} parent=1 // pred_fallthru
      _
    // Predicated region
    $region6: #{tpu_custom_call.1} parent=1 // pred_check
      _
    $region7: #{tpu_custom_call.1} parent=1 // pred_check_branch
      %27 = sbr.rel (0) target = $region9
    $region8: #{tpu_custom_call.1} parent=1 // pred_region
      %29 = vsyncadd [#allocation6], 0
      %s30 = sshll.u32 %s1, 4
      %s31 = int_to_ptr.hbm [resolvable:$true] %s30
      %s32 = sshll.u32 [#allocation5], 4
      %s33 = int_to_ptr.vmem [resolvable:$true] %s32
      %38 = dma.hbm_to_vmem [thread:$0]  %s31, 256, %s33, [#allocation6], 128, 128, 8
    $region9: #{tpu_custom_call.1} parent=1 // pred_fallthru
      _
    // Predicated region
    $region10: #{tpu_custom_call.1} parent=1 // pred_check
      _
    $region11: #{tpu_custom_call.1} parent=1 // pred_check_branch
      %40 = sbr.rel (0) target = $region13
    $region12: #{tpu_custom_call.1} parent=1 // pred_region
      %42 = vsyncadd [#allocation6], 0
      %s44 = sshll.u32 %s2, 4
      %s45 = int_to_ptr.hbm [resolvable:$true] %s44
      %s46 = sshll.u32 [#allocation7], 4
      %s47 = int_to_ptr.vmem [resolvable:$true] %s46
      %49 = dma.hbm_to_vmem [thread:$0]  %s45, 128, %s47, [#allocation6]
    $region13: #{tpu_custom_call.1} parent=1 // pred_fallthru
      _
    // Predicated region
    $region14: #{tpu_custom_call.1} parent=1 // pred_check
      _
    $region15: #{tpu_custom_call.1} parent=1 // pred_check_branch
      %51 = sbr.rel (0) target = $region17
    $region16: #{tpu_custom_call.1} parent=1 // pred_region
      _
    $region17: #{tpu_custom_call.1} parent=1 // pred_fallthru
      _
    // Predicated region
    $region18: #{tpu_custom_call.1} parent=1 // pred_check
      _
    $region19: #{tpu_custom_call.1} parent=1 // pred_check_branch
      %53 = sbr.rel (0) target = $region21
    $region20: #{tpu_custom_call.1} parent=1 // pred_region
      _
    $region21: #{tpu_custom_call.1} parent=1 // pred_fallthru
      _
    // Predicated region
    $region22: #{tpu_custom_call.1} parent=1 // pred_check
      _
    $region23: #{tpu_custom_call.1} parent=1 // pred_check_branch
      %55 = sbr.rel (0) target = $region25
    $region24: #{tpu_custom_call.1} parent=1 // pred_region
      %57 = dma.done [#allocation3], 256
    $region25: #{tpu_custom_call.1} parent=1 // pred_fallthru
      _
    // Predicated region
    $region26: #{tpu_custom_call.1} parent=1 // pred_check
      _
    $region27: #{tpu_custom_call.1} parent=1 // pred_check_branch
      %59 = sbr.rel (0) target = $region29
    $region28: #{tpu_custom_call.1} parent=1 // pred_region
      %61 = dma.done [#allocation6], 256
    $region29: #{tpu_custom_call.1} parent=1 // pred_fallthru
      _
    // Predicated region
    $region30: #{tpu_custom_call.1} parent=1 // pred_check
      _
    $region31: #{tpu_custom_call.1} parent=1 // pred_check_branch
      %63 = sbr.rel (0) target = $region33
    $region32: #{tpu_custom_call.1} parent=1 // pred_region
      %65 = dma.done [#allocation6], 128
    $region33: #{tpu_custom_call.1} parent=1 // pred_fallthru
      _
    %v66 = vld [vmem:[#allocation2] sm:$0xff]
    %v67 = vld [vmem:[#allocation2 + $0x8] sm:$0xff]
    %v68 = vld [vmem:[#allocation5] sm:$0xff]
    %v69 = vld [vmem:[#allocation5 + $0x8] sm:$0xff]
    %v70 = vadd.f32 %v66, %v68
    %v71 = vadd.f32 %v67, %v69
    %v72 = vld [vmem:[#allocation7] sm:$0xff]
    %v73 = vadd.f32 %v70, %v72
    %v74 = vadd.f32 %v71, %v72
    %v75 = vld [vmem:[%s3] sm:$0x1]
    %v76 = vld [vmem:[%s4] sm:$0x1]
    %vm77 = vcmask 261120
    %v78 = vsel %vm77, %v73, 0.0
    %79 = vadd.xlane.f32.xlu0 %v78
    %v80 = vpop.xlane.xlu0 %79
    %v81 = vsel %vm77, %v74, 0.0
    %82 = vadd.xlane.f32.xlu0 %v81
    %v83 = vpop.xlane.xlu0 %82
    %v84 = vrcp.pop 32.0
    %v85 = vmul.f32 32.0, %v84
    %v86 = vsub.f32 1.0, %v85
    %v87 = vmul.f32 %v84, %v86
    %v88 = vadd.f32 %v84, %v87
    %vm89 = vweird.f32 %v84
    %v90 = vsel %vm89, %v84, %v88
    %v91 = vmul.f32 %v80, %v90
    %v92 = vmul.f32 %v83, %v90
    %v93 = vsub.f32 %v73, %v91
    %v94 = vsub.f32 %v74, %v92
    %v95 = vmul.f32 %v93, %v93
    %v96 = vmul.f32 %v94, %v94
    %v97 = vsel %vm77, %v95, 0.0
    %98 = vadd.xlane.f32.xlu0 %v97
    %v99 = vpop.xlane.xlu0 %98
    %v100 = vsel %vm77, %v96, 0.0
    %101 = vadd.xlane.f32.xlu0 %v100
    %v102 = vpop.xlane.xlu0 %101
    %v103 = vmul.f32 %v99, %v90
    %v104 = vmul.f32 %v102, %v90
    %v105 = vadd.f32 %v103, 1e-12
    %v106 = vadd.f32 %v104, 1e-12
    %v107 = vrsqrt.pop %v105
    %v108 = vmul.f32 %v107, %v105
    %v109 = vmul.f32 %v108, %v107
    %v110 = vmul.f32 0.5, %v109
    %v111 = vsub.f32 1.5, %v110
    %v112 = vmul.f32 %v107, %v111
    %vm113 = vweird.f32 %v105
    %vm114 = vweird.f32 %v107
    %vm115 = vmor %vm113, %vm114
    %v116 = vsel %vm115, %v107, %v112
    %v117 = vrsqrt.pop %v106
    %v118 = vmul.f32 %v117, %v106
    %v119 = vmul.f32 %v118, %v117
    %v120 = vmul.f32 0.5, %v119
    %v121 = vsub.f32 1.5, %v120
    %v122 = vmul.f32 %v117, %v121
    %vm123 = vweird.f32 %v106
    %vm124 = vweird.f32 %v117
    %vm125 = vmor %vm123, %vm124
    %v126 = vsel %vm125, %v117, %v122
    %v127 = vmul.f32 %v93, %v116
    %v128 = vmul.f32 %v94, %v126
    %v130 = vperm.slane %v75, 0
    %v132 = vmul.f32 %v127, %v130
    %v133 = vmul.f32 %v128, %v130
    %v135 = vperm.slane %v76, 0
    %v137 = vadd.f32 %v132, %v135
    %v138 = vadd.f32 %v133, %v135
    %v139 = vpack.c.bf16 %v137, %v137
    %v140 = vpack.c.bf16 %v138, %v138
    %vm141 = vcmask 257024
    %142 = vst.msk [vmem:[#allocation8] sm:$0xf] %vm141, %v139
    %143 = vst.msk [vmem:[#allocation8 + $0x4] sm:$0xf] %vm141, %v140
    // Predicated region
    $region34: #{tpu_custom_call.1} parent=1 // pred_check
      _
    $region35: #{tpu_custom_call.1} parent=1 // pred_check_branch
      %145 = sbr.rel (0) target = $region37
    $region36: #{tpu_custom_call.1} parent=1 // pred_region
      %147 = vsyncadd [#allocation4], 0
      %s148 = sshll.u32 [#allocation8], 4
      %s149 = int_to_ptr.vmem [resolvable:$true] %s148
      %s150 = sshll.u32 %s5, 4
      %s151 = int_to_ptr.hbm [resolvable:$true] %s150
      %156 = dma.vmem_to_hbm [thread:$0]  %s149, 128, %s151, [#allocation4], 64, 64, 4
    $region37: #{tpu_custom_call.1} parent=1 // pred_fallthru
      _
    // Predicated region
    $region38: #{tpu_custom_call.1} parent=1 // pred_check
      _
    $region39: #{tpu_custom_call.1} parent=1 // pred_check_branch
      %158 = sbr.rel (0) target = $region41
    $region40: #{tpu_custom_call.1} parent=1 // pred_region
      %160 = dma.done [#allocation4], 128
    $region41: #{tpu_custom_call.1} parent=1 // pred_fallthru
      _
    %161 = vsyncpa [#allocation3], 1
    %162 = vsyncpa [#allocation6], 1
    %163 = vsyncpa [#allocation4], 1

</llo_original>
